<compile_context>
chip_gen: v5e
topology: v5e:2x2
jax: 0.10.0
libtpu: 0.0.40
codegen_flags: <defaults>
</compile_context>

<pallas_src>
import jax
import jax.numpy as jnp
from jax.experimental import pallas as pl
from jax.experimental.pallas import tpu as pltpu
import numpy as np

IN_DIM = 2        # logical input features
HID = 50          # logical hidden width
OUT_DIM = 1       # logical output width
N_MID = 10        # number of hidden 50->50 blocks

HID_PAD = 128     # lane-dense (padded) hidden width
OUT_PAD = 128     # lane-dense (padded) output width; wrapper slices [:, :OUT_DIM]


def _round_up(n, m):
    return ((n + m - 1) // m) * m


def testnet_kernel(x_ref, w0_ref, b0_ref, wmid_ref, bmid_ref, wf_ref, bf_ref, o_ref):
    cdt = w0_ref.dtype  # matmul-operand dtype (f32 or bf16); accumulation stays f32

    # Block 0: Linear(IN_DIM, HID) + ReLU.
    h = jnp.dot(x_ref[...].astype(cdt), w0_ref[...],
                preferred_element_type=jnp.float32)
    h = jnp.maximum(h + b0_ref[...], 0.0)

    # 10 hidden blocks: Linear(HID, HID) + ReLU, statically unrolled
    # (static weight/bias slices, full pipelining of the dot+ReLU chain).
    for i in range(N_MID):
        h = jnp.dot(h.astype(cdt), wmid_ref[i],
                    preferred_element_type=jnp.float32) + bmid_ref[i]
        h = jnp.maximum(h, 0.0)

    # Final Linear(HID, OUT), no activation.  Lane-dense padded output store.
    o_ref[...] = jnp.dot(h.astype(cdt), wf_ref[...],
                         preferred_element_type=jnp.float32) + bf_ref[...]


def testnet_forward(x, padded_params, *, tb=128):
    """x: [B, IN_DIM] f32.  padded_params: from pad_params().  Returns [B, OUT_DIM] f32."""
    w0, b0, wmid, bmid, wf, bf = padded_params
    B = x.shape[0]
    TB = tb if B >= tb else _round_up(max(B, 1), 8)
    Bp = _round_up(B, TB)
    if Bp != B:
        x = jnp.pad(x, ((0, Bp - B), (0, 0)))
    grid = (Bp // TB,)

    flops = 2 * Bp * (IN_DIM * HID_PAD + N_MID * HID_PAD * HID_PAD + HID_PAD * OUT_PAD)
    param_bytes = sum(int(np.prod(p.shape)) * p.dtype.itemsize
                      for p in (w0, b0, wmid, bmid, wf, bf))
    bytes_accessed = param_bytes + Bp * IN_DIM * 4 + Bp * OUT_PAD * 4

    out = pl.pallas_call(
        testnet_kernel,
        out_shape=jax.ShapeDtypeStruct((Bp, OUT_PAD), jnp.float32),
        grid=grid,
        in_specs=[
            pl.BlockSpec((TB, IN_DIM), lambda i: (i, 0)),                  # x: tiled over batch
            pl.BlockSpec((IN_DIM, HID_PAD), lambda i: (0, 0)),             # w0 (resident)
            pl.BlockSpec((1, HID_PAD), lambda i: (0, 0)),                  # b0 (resident)
            pl.BlockSpec((N_MID, HID_PAD, HID_PAD), lambda i: (0, 0, 0)),  # wmid (resident)
            pl.BlockSpec((N_MID, 1, HID_PAD), lambda i: (0, 0, 0)),        # bmid (resident)
            pl.BlockSpec((HID_PAD, OUT_PAD), lambda i: (0, 0)),            # wf (resident)
            pl.BlockSpec((1, OUT_PAD), lambda i: (0, 0)),                  # bf (resident)
        ],
        out_specs=pl.BlockSpec((TB, OUT_PAD), lambda i: (i, 0)),
        compiler_params=pltpu.CompilerParams(
            dimension_semantics=("parallel",)),
        cost_estimate=pl.CostEstimate(flops=flops, transcendentals=0,
                                      bytes_accessed=bytes_accessed),
    )(x, w0, b0, wmid, bmid, wf, bf)
    return out[:B, :OUT_DIM]


def init_params(key):
    """torch.nn.Linear default init (U[-1/sqrt(fan_in), +]) at logical shapes, [in, out] layout."""
    ks = jax.random.split(key, 6)

    def uni(k, shape, fan_in):
        bound = 1.0 / np.sqrt(fan_in)
        return jax.random.uniform(k, shape, jnp.float32, -bound, bound)

    w0 = uni(ks[0], (IN_DIM, HID), IN_DIM)          # Linear(2, 50), stored [in, out]
    b0 = uni(ks[1], (1, HID), IN_DIM)
    wmid = uni(ks[2], (N_MID, HID, HID), HID)       # 10 x Linear(50, 50)
    bmid = uni(ks[3], (N_MID, 1, HID), HID)
    wf = uni(ks[4], (HID, OUT_DIM), HID)            # Linear(50, 1)
    bf = uni(ks[5], (1, OUT_DIM), HID)
    return (w0, b0, wmid, bmid, wf, bf)


def pad_params(params, weight_dtype=jnp.float32):
    """Zero-pad logical params to lane-dense kernel shapes.

    Only the matmul weights are cast to `weight_dtype` (bf16 on v6e/v7x for
    native-rate MXU); biases stay f32 so the bias-add/ReLU run on the f32 VPU
    path (important on v5e which has no bf16 VPU).
    """
    w0, b0, wmid, bmid, wf, bf = params
    w0p = jnp.zeros((IN_DIM, HID_PAD), jnp.float32).at[:, :HID].set(w0).astype(weight_dtype)
    b0p = jnp.zeros((1, HID_PAD), jnp.float32).at[:, :HID].set(b0)
    wmidp = (jnp.zeros((N_MID, HID_PAD, HID_PAD), jnp.float32)
             .at[:, :HID, :HID].set(wmid).astype(weight_dtype))
    bmidp = jnp.zeros((N_MID, 1, HID_PAD), jnp.float32).at[:, :, :HID].set(bmid)
    wfp = (jnp.zeros((HID_PAD, OUT_PAD), jnp.float32)
           .at[:HID, :OUT_DIM].set(wf).astype(weight_dtype))
    bfp = jnp.zeros((1, OUT_PAD), jnp.float32).at[:, :OUT_DIM].set(bf)
    return (w0p, b0p, wmidp, bmidp, wfp, bfp)


def testnet_reference(x, params):
    """Pure-JAX reference (unpadded, f32) for correctness checking."""
    w0, b0, wmid, bmid, wf, bf = params
    h = jnp.maximum(x @ w0 + b0, 0.0)
    for i in range(N_MID):
        h = jnp.maximum(h @ wmid[i] + bmid[i], 0.0)
    return h @ wf + bf


if __name__ == "__main__":
    key = jax.random.PRNGKey(0)
    k_param, k_x1, k_x2 = jax.random.split(key, 3)

    params = init_params(k_param)
    params_f32 = pad_params(params, jnp.float32)

    # Small batch (as in the original regression test): one grid step.
    B = 8
    x = jax.random.normal(k_x1, (B, IN_DIM), jnp.float32)
    out = jax.block_until_ready(testnet_forward(x, params_f32))
    ref = testnet_reference(x, params)
    assert out.shape == (B, OUT_DIM)
    np.testing.assert_allclose(np.asarray(out), np.asarray(ref), rtol=1e-5, atol=1e-5)

    # Larger non-multiple batch: exercises grid > 1, batch padding, and the
    # "parallel" (megacore) grid axis.
    B2 = 300
    x2 = jax.random.normal(k_x2, (B2, IN_DIM), jnp.float32)
    out2 = jax.block_until_ready(testnet_forward(x2, params_f32, tb=128))
    ref2 = testnet_reference(x2, params)
    assert out2.shape == (B2, OUT_DIM)
    np.testing.assert_allclose(np.asarray(out2), np.asarray(ref2), rtol=1e-5, atol=1e-5)

    # Optional bf16-weight path (native-rate MXU on v6e/v7x), f32 accumulation.
    params_bf16 = pad_params(params, jnp.bfloat16)
    out_bf16 = jax.block_until_ready(testnet_forward(x2, params_bf16, tb=128))
    assert out_bf16.shape == (B2, OUT_DIM)
    assert bool(jnp.all(jnp.isfinite(out_bf16)))
    np.testing.assert_allclose(np.asarray(out_bf16), np.asarray(ref2), rtol=1e-1, atol=1e-1)

    print("KERNEL_OK")
</pallas_src>

<mosaic_0001>
module attributes {stable_mosaic.version = 11 : i64} {
  func.func @testnet_kernel(%arg0: i32, %arg1: memref<8x2xf32, #tpu.memory_space<vmem>>, %arg2: memref<2x128xf32, #tpu.memory_space<vmem>>, %arg3: memref<1x128xf32, #tpu.memory_space<vmem>>, %arg4: memref<10x128x128xf32, #tpu.memory_space<vmem>>, %arg5: memref<10x1x128xf32, #tpu.memory_space<vmem>>, %arg6: memref<128x128xf32, #tpu.memory_space<vmem>>, %arg7: memref<1x128xf32, #tpu.memory_space<vmem>>, %arg8: memref<8x128xf32, #tpu.memory_space<vmem>>) attributes {dimension_semantics = [#tpu.dimension_semantics<parallel>], iteration_bounds = array<i64: 1>, scalar_prefetch = 0 : i64, scratch_operands = 0 : i64, tpu.core_type = #tpu.core_type<tc>, window_params = [{transform_indices = @transform_0, window_bounds = array<i64: 8, 2>}, {pipeline_mode = #tpu.pipeline_mode<synchronous>, transform_indices = @transform_1, window_bounds = array<i64: 2, 128>}, {pipeline_mode = #tpu.pipeline_mode<synchronous>, transform_indices = @transform_2, window_bounds = array<i64: 1, 128>}, {pipeline_mode = #tpu.pipeline_mode<synchronous>, transform_indices = @transform_3, window_bounds = array<i64: 10, 128, 128>}, {pipeline_mode = #tpu.pipeline_mode<synchronous>, transform_indices = @transform_4, window_bounds = array<i64: 10, 1, 128>}, {pipeline_mode = #tpu.pipeline_mode<synchronous>, transform_indices = @transform_5, window_bounds = array<i64: 128, 128>}, {pipeline_mode = #tpu.pipeline_mode<synchronous>, transform_indices = @transform_6, window_bounds = array<i64: 1, 128>}, {transform_indices = @transform_7, window_bounds = array<i64: 8, 128>}]} {
    %c0 = arith.constant 0 : index
    %c0_0 = arith.constant 0 : index
    %0 = vector.load %arg1[%c0, %c0_0] : memref<8x2xf32, #tpu.memory_space<vmem>>, vector<8x2xf32>
    %c0_1 = arith.constant 0 : index
    %c0_2 = arith.constant 0 : index
    %1 = vector.load %arg2[%c0_1, %c0_2] : memref<2x128xf32, #tpu.memory_space<vmem>>, vector<2x128xf32>
    %cst = arith.constant dense<0.000000e+00> : vector<8x128xf32>
    %2 = tpu.matmul %0, %1, %cst {dimension_numbers = #tpu.dot_dimension_numbers<[1], [0], [0], [1], [0, 0, 1, 1], [], []>} : vector<8x2xf32>, vector<2x128xf32>, vector<8x128xf32> -> vector<8x128xf32>
    %c0_3 = arith.constant 0 : index
    %c0_4 = arith.constant 0 : index
    %3 = vector.load %arg3[%c0_3, %c0_4] : memref<1x128xf32, #tpu.memory_space<vmem>>, vector<1x128xf32>
    %4 = vector.broadcast %3 : vector<1x128xf32> to vector<8x128xf32>
    %5 = arith.addf %2, %4 : vector<8x128xf32>
    %cst_5 = arith.constant 0.000000e+00 : f32
    %6 = vector.broadcast %cst_5 : f32 to vector<8x128xf32>
    %7 = arith.maximumf %5, %6 : vector<8x128xf32>
    %c0_6 = arith.constant 0 : index
    %c0_7 = arith.constant 0 : index
    %c0_8 = arith.constant 0 : index
    %8 = vector.load %arg4[%c0_6, %c0_7, %c0_8] : memref<10x128x128xf32, #tpu.memory_space<vmem>>, vector<1x128x128xf32>
    %9 = vector.shape_cast %8 : vector<1x128x128xf32> to vector<128x128xf32>
    %cst_9 = arith.constant dense<0.000000e+00> : vector<8x128xf32>
    %10 = tpu.matmul %7, %9, %cst_9 {dimension_numbers = #tpu.dot_dimension_numbers<[1], [0], [0], [1], [0, 0, 1, 1], [], []>} : vector<8x128xf32>, vector<128x128xf32>, vector<8x128xf32> -> vector<8x128xf32>
    %c0_10 = arith.constant 0 : index
    %c0_11 = arith.constant 0 : index
    %c0_12 = arith.constant 0 : index
    %11 = vector.load %arg5[%c0_10, %c0_11, %c0_12] : memref<10x1x128xf32, #tpu.memory_space<vmem>>, vector<1x1x128xf32>
    %12 = vector.shape_cast %11 : vector<1x1x128xf32> to vector<1x128xf32>
    %13 = vector.broadcast %12 : vector<1x128xf32> to vector<8x128xf32>
    %14 = arith.addf %10, %13 : vector<8x128xf32>
    %cst_13 = arith.constant 0.000000e+00 : f32
    %15 = vector.broadcast %cst_13 : f32 to vector<8x128xf32>
    %16 = arith.maximumf %14, %15 : vector<8x128xf32>
    %c1 = arith.constant 1 : index
    %c0_14 = arith.constant 0 : index
    %c0_15 = arith.constant 0 : index
    %17 = vector.load %arg4[%c1, %c0_14, %c0_15] : memref<10x128x128xf32, #tpu.memory_space<vmem>>, vector<1x128x128xf32>
    %18 = vector.shape_cast %17 : vector<1x128x128xf32> to vector<128x128xf32>
    %cst_16 = arith.constant dense<0.000000e+00> : vector<8x128xf32>
    %19 = tpu.matmul %16, %18, %cst_16 {dimension_numbers = #tpu.dot_dimension_numbers<[1], [0], [0], [1], [0, 0, 1, 1], [], []>} : vector<8x128xf32>, vector<128x128xf32>, vector<8x128xf32> -> vector<8x128xf32>
    %c1_17 = arith.constant 1 : index
    %c0_18 = arith.constant 0 : index
    %c0_19 = arith.constant 0 : index
    %20 = vector.load %arg5[%c1_17, %c0_18, %c0_19] : memref<10x1x128xf32, #tpu.memory_space<vmem>>, vector<1x1x128xf32>
    %21 = vector.shape_cast %20 : vector<1x1x128xf32> to vector<1x128xf32>
    %22 = vector.broadcast %21 : vector<1x128xf32> to vector<8x128xf32>
    %23 = arith.addf %19, %22 : vector<8x128xf32>
    %cst_20 = arith.constant 0.000000e+00 : f32
    %24 = vector.broadcast %cst_20 : f32 to vector<8x128xf32>
    %25 = arith.maximumf %23, %24 : vector<8x128xf32>
    %c2 = arith.constant 2 : index
    %c0_21 = arith.constant 0 : index
    %c0_22 = arith.constant 0 : index
    %26 = vector.load %arg4[%c2, %c0_21, %c0_22] : memref<10x128x128xf32, #tpu.memory_space<vmem>>, vector<1x128x128xf32>
    %27 = vector.shape_cast %26 : vector<1x128x128xf32> to vector<128x128xf32>
    %cst_23 = arith.constant dense<0.000000e+00> : vector<8x128xf32>
    %28 = tpu.matmul %25, %27, %cst_23 {dimension_numbers = #tpu.dot_dimension_numbers<[1], [0], [0], [1], [0, 0, 1, 1], [], []>} : vector<8x128xf32>, vector<128x128xf32>, vector<8x128xf32> -> vector<8x128xf32>
    %c2_24 = arith.constant 2 : index
    %c0_25 = arith.constant 0 : index
    %c0_26 = arith.constant 0 : index
    %29 = vector.load %arg5[%c2_24, %c0_25, %c0_26] : memref<10x1x128xf32, #tpu.memory_space<vmem>>, vector<1x1x128xf32>
    %30 = vector.shape_cast %29 : vector<1x1x128xf32> to vector<1x128xf32>
    %31 = vector.broadcast %30 : vector<1x128xf32> to vector<8x128xf32>
    %32 = arith.addf %28, %31 : vector<8x128xf32>
    %cst_27 = arith.constant 0.000000e+00 : f32
    %33 = vector.broadcast %cst_27 : f32 to vector<8x128xf32>
    %34 = arith.maximumf %32, %33 : vector<8x128xf32>
    %c3 = arith.constant 3 : index
    %c0_28 = arith.constant 0 : index
    %c0_29 = arith.constant 0 : index
    %35 = vector.load %arg4[%c3, %c0_28, %c0_29] : memref<10x128x128xf32, #tpu.memory_space<vmem>>, vector<1x128x128xf32>
    %36 = vector.shape_cast %35 : vector<1x128x128xf32> to vector<128x128xf32>
    %cst_30 = arith.constant dense<0.000000e+00> : vector<8x128xf32>
    %37 = tpu.matmul %34, %36, %cst_30 {dimension_numbers = #tpu.dot_dimension_numbers<[1], [0], [0], [1], [0, 0, 1, 1], [], []>} : vector<8x128xf32>, vector<128x128xf32>, vector<8x128xf32> -> vector<8x128xf32>
    %c3_31 = arith.constant 3 : index
    %c0_32 = arith.constant 0 : index
    %c0_33 = arith.constant 0 : index
    %38 = vector.load %arg5[%c3_31, %c0_32, %c0_33] : memref<10x1x128xf32, #tpu.memory_space<vmem>>, vector<1x1x128xf32>
    %39 = vector.shape_cast %38 : vector<1x1x128xf32> to vector<1x128xf32>
    %40 = vector.broadcast %39 : vector<1x128xf32> to vector<8x128xf32>
    %41 = arith.addf %37, %40 : vector<8x128xf32>
    %cst_34 = arith.constant 0.000000e+00 : f32
    %42 = vector.broadcast %cst_34 : f32 to vector<8x128xf32>
    %43 = arith.maximumf %41, %42 : vector<8x128xf32>
    %c4 = arith.constant 4 : index
    %c0_35 = arith.constant 0 : index
    %c0_36 = arith.constant 0 : index
    %44 = vector.load %arg4[%c4, %c0_35, %c0_36] : memref<10x128x128xf32, #tpu.memory_space<vmem>>, vector<1x128x128xf32>
    %45 = vector.shape_cast %44 : vector<1x128x128xf32> to vector<128x128xf32>
    %cst_37 = arith.constant dense<0.000000e+00> : vector<8x128xf32>
    %46 = tpu.matmul %43, %45, %cst_37 {dimension_numbers = #tpu.dot_dimension_numbers<[1], [0], [0], [1], [0, 0, 1, 1], [], []>} : vector<8x128xf32>, vector<128x128xf32>, vector<8x128xf32> -> vector<8x128xf32>
    %c4_38 = arith.constant 4 : index
    %c0_39 = arith.constant 0 : index
    %c0_40 = arith.constant 0 : index
    %47 = vector.load %arg5[%c4_38, %c0_39, %c0_40] : memref<10x1x128xf32, #tpu.memory_space<vmem>>, vector<1x1x128xf32>
    %48 = vector.shape_cast %47 : vector<1x1x128xf32> to vector<1x128xf32>
    %49 = vector.broadcast %48 : vector<1x128xf32> to vector<8x128xf32>
    %50 = arith.addf %46, %49 : vector<8x128xf32>
    %cst_41 = arith.constant 0.000000e+00 : f32
    %51 = vector.broadcast %cst_41 : f32 to vector<8x128xf32>
    %52 = arith.maximumf %50, %51 : vector<8x128xf32>
    %c5 = arith.constant 5 : index
    %c0_42 = arith.constant 0 : index
    %c0_43 = arith.constant 0 : index
    %53 = vector.load %arg4[%c5, %c0_42, %c0_43] : memref<10x128x128xf32, #tpu.memory_space<vmem>>, vector<1x128x128xf32>
    %54 = vector.shape_cast %53 : vector<1x128x128xf32> to vector<128x128xf32>
    %cst_44 = arith.constant dense<0.000000e+00> : vector<8x128xf32>
    %55 = tpu.matmul %52, %54, %cst_44 {dimension_numbers = #tpu.dot_dimension_numbers<[1], [0], [0], [1], [0, 0, 1, 1], [], []>} : vector<8x128xf32>, vector<128x128xf32>, vector<8x128xf32> -> vector<8x128xf32>
    %c5_45 = arith.constant 5 : index
    %c0_46 = arith.constant 0 : index
    %c0_47 = arith.constant 0 : index
    %56 = vector.load %arg5[%c5_45, %c0_46, %c0_47] : memref<10x1x128xf32, #tpu.memory_space<vmem>>, vector<1x1x128xf32>
    %57 = vector.shape_cast %56 : vector<1x1x128xf32> to vector<1x128xf32>
    %58 = vector.broadcast %57 : vector<1x128xf32> to vector<8x128xf32>
    %59 = arith.addf %55, %58 : vector<8x128xf32>
    %cst_48 = arith.constant 0.000000e+00 : f32
    %60 = vector.broadcast %cst_48 : f32 to vector<8x128xf32>
    %61 = arith.maximumf %59, %60 : vector<8x128xf32>
    %c6 = arith.constant 6 : index
    %c0_49 = arith.constant 0 : index
    %c0_50 = arith.constant 0 : index
    %62 = vector.load %arg4[%c6, %c0_49, %c0_50] : memref<10x128x128xf32, #tpu.memory_space<vmem>>, vector<1x128x128xf32>
    %63 = vector.shape_cast %62 : vector<1x128x128xf32> to vector<128x128xf32>
    %cst_51 = arith.constant dense<0.000000e+00> : vector<8x128xf32>
    %64 = tpu.matmul %61, %63, %cst_51 {dimension_numbers = #tpu.dot_dimension_numbers<[1], [0], [0], [1], [0, 0, 1, 1], [], []>} : vector<8x128xf32>, vector<128x128xf32>, vector<8x128xf32> -> vector<8x128xf32>
    %c6_52 = arith.constant 6 : index
    %c0_53 = arith.constant 0 : index
    %c0_54 = arith.constant 0 : index
    %65 = vector.load %arg5[%c6_52, %c0_53, %c0_54] : memref<10x1x128xf32, #tpu.memory_space<vmem>>, vector<1x1x128xf32>
    %66 = vector.shape_cast %65 : vector<1x1x128xf32> to vector<1x128xf32>
    %67 = vector.broadcast %66 : vector<1x128xf32> to vector<8x128xf32>
    %68 = arith.addf %64, %67 : vector<8x128xf32>
    %cst_55 = arith.constant 0.000000e+00 : f32
    %69 = vector.broadcast %cst_55 : f32 to vector<8x128xf32>
    %70 = arith.maximumf %68, %69 : vector<8x128xf32>
    %c7 = arith.constant 7 : index
    %c0_56 = arith.constant 0 : index
    %c0_57 = arith.constant 0 : index
    %71 = vector.load %arg4[%c7, %c0_56, %c0_57] : memref<10x128x128xf32, #tpu.memory_space<vmem>>, vector<1x128x128xf32>
    %72 = vector.shape_cast %71 : vector<1x128x128xf32> to vector<128x128xf32>
    %cst_58 = arith.constant dense<0.000000e+00> : vector<8x128xf32>
    %73 = tpu.matmul %70, %72, %cst_58 {dimension_numbers = #tpu.dot_dimension_numbers<[1], [0], [0], [1], [0, 0, 1, 1], [], []>} : vector<8x128xf32>, vector<128x128xf32>, vector<8x128xf32> -> vector<8x128xf32>
    %c7_59 = arith.constant 7 : index
    %c0_60 = arith.constant 0 : index
    %c0_61 = arith.constant 0 : index
    %74 = vector.load %arg5[%c7_59, %c0_60, %c0_61] : memref<10x1x128xf32, #tpu.memory_space<vmem>>, vector<1x1x128xf32>
    %75 = vector.shape_cast %74 : vector<1x1x128xf32> to vector<1x128xf32>
    %76 = vector.broadcast %75 : vector<1x128xf32> to vector<8x128xf32>
    %77 = arith.addf %73, %76 : vector<8x128xf32>
    %cst_62 = arith.constant 0.000000e+00 : f32
    %78 = vector.broadcast %cst_62 : f32 to vector<8x128xf32>
    %79 = arith.maximumf %77, %78 : vector<8x128xf32>
    %c8 = arith.constant 8 : index
    %c0_63 = arith.constant 0 : index
    %c0_64 = arith.constant 0 : index
    %80 = vector.load %arg4[%c8, %c0_63, %c0_64] : memref<10x128x128xf32, #tpu.memory_space<vmem>>, vector<1x128x128xf32>
    %81 = vector.shape_cast %80 : vector<1x128x128xf32> to vector<128x128xf32>
    %cst_65 = arith.constant dense<0.000000e+00> : vector<8x128xf32>
    %82 = tpu.matmul %79, %81, %cst_65 {dimension_numbers = #tpu.dot_dimension_numbers<[1], [0], [0], [1], [0, 0, 1, 1], [], []>} : vector<8x128xf32>, vector<128x128xf32>, vector<8x128xf32> -> vector<8x128xf32>
    %c8_66 = arith.constant 8 : index
    %c0_67 = arith.constant 0 : index
    %c0_68 = arith.constant 0 : index
    %83 = vector.load %arg5[%c8_66, %c0_67, %c0_68] : memref<10x1x128xf32, #tpu.memory_space<vmem>>, vector<1x1x128xf32>
    %84 = vector.shape_cast %83 : vector<1x1x128xf32> to vector<1x128xf32>
    %85 = vector.broadcast %84 : vector<1x128xf32> to vector<8x128xf32>
    %86 = arith.addf %82, %85 : vector<8x128xf32>
    %cst_69 = arith.constant 0.000000e+00 : f32
    %87 = vector.broadcast %cst_69 : f32 to vector<8x128xf32>
    %88 = arith.maximumf %86, %87 : vector<8x128xf32>
    %c9 = arith.constant 9 : index
    %c0_70 = arith.constant 0 : index
    %c0_71 = arith.constant 0 : index
    %89 = vector.load %arg4[%c9, %c0_70, %c0_71] : memref<10x128x128xf32, #tpu.memory_space<vmem>>, vector<1x128x128xf32>
    %90 = vector.shape_cast %89 : vector<1x128x128xf32> to vector<128x128xf32>
    %cst_72 = arith.constant dense<0.000000e+00> : vector<8x128xf32>
    %91 = tpu.matmul %88, %90, %cst_72 {dimension_numbers = #tpu.dot_dimension_numbers<[1], [0], [0], [1], [0, 0, 1, 1], [], []>} : vector<8x128xf32>, vector<128x128xf32>, vector<8x128xf32> -> vector<8x128xf32>
    %c9_73 = arith.constant 9 : index
    %c0_74 = arith.constant 0 : index
    %c0_75 = arith.constant 0 : index
    %92 = vector.load %arg5[%c9_73, %c0_74, %c0_75] : memref<10x1x128xf32, #tpu.memory_space<vmem>>, vector<1x1x128xf32>
    %93 = vector.shape_cast %92 : vector<1x1x128xf32> to vector<1x128xf32>
    %94 = vector.broadcast %93 : vector<1x128xf32> to vector<8x128xf32>
    %95 = arith.addf %91, %94 : vector<8x128xf32>
    %cst_76 = arith.constant 0.000000e+00 : f32
    %96 = vector.broadcast %cst_76 : f32 to vector<8x128xf32>
    %97 = arith.maximumf %95, %96 : vector<8x128xf32>
    %c0_77 = arith.constant 0 : index
    %c0_78 = arith.constant 0 : index
    %98 = vector.load %arg6[%c0_77, %c0_78] : memref<128x128xf32, #tpu.memory_space<vmem>>, vector<128x128xf32>
    %cst_79 = arith.constant dense<0.000000e+00> : vector<8x128xf32>
    %99 = tpu.matmul %97, %98, %cst_79 {dimension_numbers = #tpu.dot_dimension_numbers<[1], [0], [0], [1], [0, 0, 1, 1], [], []>} : vector<8x128xf32>, vector<128x128xf32>, vector<8x128xf32> -> vector<8x128xf32>
    %c0_80 = arith.constant 0 : index
    %c0_81 = arith.constant 0 : index
    %100 = vector.load %arg7[%c0_80, %c0_81] : memref<1x128xf32, #tpu.memory_space<vmem>>, vector<1x128xf32>
    %101 = vector.broadcast %100 : vector<1x128xf32> to vector<8x128xf32>
    %102 = arith.addf %99, %101 : vector<8x128xf32>
    %c0_82 = arith.constant 0 : index
    %c0_83 = arith.constant 0 : index
    %103 = vector.load %arg8[%c0_82, %c0_83] : memref<8x128xf32, #tpu.memory_space<vmem>>, vector<8x128xf32>
    tpu.vector_store %arg8[%c0_82, %c0_83], %102 {strides = array<i32>} : memref<8x128xf32, #tpu.memory_space<vmem>>, vector<8x128xf32>,
    return
  }
  func.func @transform_0(%arg0: i32) -> (i32, i32) {
    %c0_i32 = arith.constant 0 : i32
    %c0_i32_0 = arith.constant 0 : i32
    return %arg0, %c0_i32 : i32, i32
  }
  func.func @transform_1(%arg0: i32) -> (i32, i32) {
    %c0_i32 = arith.constant 0 : i32
    %c0_i32_0 = arith.constant 0 : i32
    %c0_i32_1 = arith.constant 0 : i32
    return %c0_i32, %c0_i32_0 : i32, i32
  }
  func.func @transform_2(%arg0: i32) -> (i32, i32) {
    %c0_i32 = arith.constant 0 : i32
    %c0_i32_0 = arith.constant 0 : i32
    %c0_i32_1 = arith.constant 0 : i32
    return %c0_i32, %c0_i32_0 : i32, i32
  }
  func.func @transform_3(%arg0: i32) -> (i32, i32, i32) {
    %c0_i32 = arith.constant 0 : i32
    %c0_i32_0 = arith.constant 0 : i32
    %c0_i32_1 = arith.constant 0 : i32
    %c0_i32_2 = arith.constant 0 : i32
    return %c0_i32, %c0_i32_0, %c0_i32_1 : i32, i32, i32
  }
  func.func @transform_4(%arg0: i32) -> (i32, i32, i32) {
    %c0_i32 = arith.constant 0 : i32
    %c0_i32_0 = arith.constant 0 : i32
    %c0_i32_1 = arith.constant 0 : i32
    %c0_i32_2 = arith.constant 0 : i32
    return %c0_i32, %c0_i32_0, %c0_i32_1 : i32, i32, i32
  }
  func.func @transform_5(%arg0: i32) -> (i32, i32) {
    %c0_i32 = arith.constant 0 : i32
    %c0_i32_0 = arith.constant 0 : i32
    %c0_i32_1 = arith.constant 0 : i32
    return %c0_i32, %c0_i32_0 : i32, i32
  }
  func.func @transform_6(%arg0: i32) -> (i32, i32) {
    %c0_i32 = arith.constant 0 : i32
    %c0_i32_0 = arith.constant 0 : i32
    %c0_i32_1 = arith.constant 0 : i32
    return %c0_i32, %c0_i32_0 : i32, i32
  }
  func.func @transform_7(%arg0: i32) -> (i32, i32) {
    %c0_i32 = arith.constant 0 : i32
    %c0_i32_0 = arith.constant 0 : i32
    return %arg0, %c0_i32 : i32, i32
  }
}

</mosaic_0001>

<llo_original>
// kernel: tpu_custom_call.1
$region0: #{tpu_custom_call.1}
  #allocation0 [shape = 'u32[]', space=smem, size = 0x4, offset = 0x4, fixed_abs, tag = 'smem constant byte address 0x4 - core index']
  #allocation1 [shape = 'u32[72,128]{1,0:T(1,128)}', space=vmem, size = 0x9000, scoped, tag = 'internal scratch']
  %s0 = inlined_call_operand.vmem [shape: f32[8,2], index: 0, kind: input, shape index: {}]
  %s1 = inlined_call_operand.vmem [shape: f32[2,128], index: 1, kind: input, shape index: {}]
  %s2 = inlined_call_operand.vmem [shape: f32[1,128], index: 2, kind: input, shape index: {}]
  %s3 = inlined_call_operand.hbm [shape: f32[10,128,128], index: 3, kind: input, shape index: {}]
  %s4 = inlined_call_operand.vmem [shape: f32[10,1,128], index: 4, kind: input, shape index: {}]
  %s5 = inlined_call_operand.hbm [shape: f32[128,128], index: 5, kind: input, shape index: {}]
  %s6 = inlined_call_operand.vmem [shape: f32[1,128], index: 6, kind: input, shape index: {}]
  %s7 = inlined_call_operand.hbm [shape: f32[8,128], index: 7, kind: output, shape index: {}]
  %s8 = sld [smem:[#allocation0]]
  $region46: #{tpu_custom_call.1} parent=0
    _
  %s10 = ssub.s32 1, %s8
  %s11 = scalar_select 0, %s10, %s8
  $region1: #{tpu_custom_call.1} parent=0
    #allocation2 [shape = 'u8[655360]{0}', space=vmem, size = 0xa0000, scoped, tag = 'input window, operand 3, single buffered']
    #allocation3 [shape = 's32[1]{0}', space=sflag, size = 0x4, scoped, tag = 'scoped memory for tpu_custom_call.1']
    #allocation4 [shape = 's32[1]{0}', space=sflag, size = 0x4, scoped, tag = 'scoped memory for tpu_custom_call.1']
    #allocation5 [shape = 'u8[65536]{0}', space=vmem, size = 0x10000, scoped, tag = 'input window, operand 5, single buffered']
    #allocation6 [shape = 's32[1]{0}', space=sflag, size = 0x4, scoped, tag = 'scoped memory for tpu_custom_call.1']
    #allocation7 [shape = 'u8[4096]{0}', space=vmem, size = 0x1000, scoped, tag = 'output window, operand 0, single buffered']
    %12 = vsyncpa [#allocation3], 0
    %13 = vsyncpa [#allocation6], 0
    %14 = vsyncpa [#allocation4], 0
    // Predicated region
    $region2: #{tpu_custom_call.1} parent=1 // pred_check
      _
    $region3: #{tpu_custom_call.1} parent=1 // pred_check_branch
      %16 = sbr.rel (0) target = $region5
    $region4: #{tpu_custom_call.1} parent=1 // pred_region
      _
    $region5: #{tpu_custom_call.1} parent=1 // pred_fallthru
      _
    // Predicated region
    $region6: #{tpu_custom_call.1} parent=1 // pred_check
      _
    $region7: #{tpu_custom_call.1} parent=1 // pred_check_branch
      %18 = sbr.rel (0) target = $region9
    $region8: #{tpu_custom_call.1} parent=1 // pred_region
      _
    $region9: #{tpu_custom_call.1} parent=1 // pred_fallthru
      _
    // Predicated region
    $region10: #{tpu_custom_call.1} parent=1 // pred_check
      _
    $region11: #{tpu_custom_call.1} parent=1 // pred_check_branch
      %20 = sbr.rel (0) target = $region13
    $region12: #{tpu_custom_call.1} parent=1 // pred_region
      _
    $region13: #{tpu_custom_call.1} parent=1 // pred_fallthru
      _
    // Predicated region
    $region14: #{tpu_custom_call.1} parent=1 // pred_check
      _
    $region15: #{tpu_custom_call.1} parent=1 // pred_check_branch
      %22 = sbr.rel (0) target = $region17
    $region16: #{tpu_custom_call.1} parent=1 // pred_region
      %24 = vsyncadd [#allocation3], 0
      %s25 = sshll.u32 %s3, 4
      %s26 = int_to_ptr.hbm [resolvable:$true] %s25
      %s27 = sshll.u32 [#allocation2], 4
      %s28 = int_to_ptr.vmem [resolvable:$true] %s27
      %33 = dma.hbm_to_vmem [thread:$0]  %s26, 20480, %s28, [#allocation3], 128, 128, 8
    $region17: #{tpu_custom_call.1} parent=1 // pred_fallthru
      _
    // Predicated region
    $region18: #{tpu_custom_call.1} parent=1 // pred_check
      _
    $region19: #{tpu_custom_call.1} parent=1 // pred_check_branch
      %35 = sbr.rel (0) target = $region21
    $region20: #{tpu_custom_call.1} parent=1 // pred_region
      _
    $region21: #{tpu_custom_call.1} parent=1 // pred_fallthru
      _
    // Predicated region
    $region22: #{tpu_custom_call.1} parent=1 // pred_check
      _
    $region23: #{tpu_custom_call.1} parent=1 // pred_check_branch
      %37 = sbr.rel (0) target = $region25
    $region24: #{tpu_custom_call.1} parent=1 // pred_region
      %39 = vsyncadd [#allocation6], 0
      %s40 = sshll.u32 %s5, 4
      %s41 = int_to_ptr.hbm [resolvable:$true] %s40
      %s42 = sshll.u32 [#allocation5], 4
      %s43 = int_to_ptr.vmem [resolvable:$true] %s42
      %48 = dma.hbm_to_vmem [thread:$0]  %s41, 2048, %s43, [#allocation6], 128, 128, 8
    $region25: #{tpu_custom_call.1} parent=1 // pred_fallthru
      _
    // Predicated region
    $region26: #{tpu_custom_call.1} parent=1 // pred_check
      _
    $region27: #{tpu_custom_call.1} parent=1 // pred_check_branch
      %50 = sbr.rel (0) target = $region29
    $region28: #{tpu_custom_call.1} parent=1 // pred_region
      _
    $region29: #{tpu_custom_call.1} parent=1 // pred_fallthru
      _
    // Predicated region
    $region30: #{tpu_custom_call.1} parent=1 // pred_check
      _
    $region31: #{tpu_custom_call.1} parent=1 // pred_check_branch
      %52 = sbr.rel (0) target = $region33
    $region32: #{tpu_custom_call.1} parent=1 // pred_region
      %54 = dma.done [#allocation3], 20480
    $region33: #{tpu_custom_call.1} parent=1 // pred_fallthru
      _
    // Predicated region
    $region34: #{tpu_custom_call.1} parent=1 // pred_check
      _
    $region35: #{tpu_custom_call.1} parent=1 // pred_check_branch
      %56 = sbr.rel (0) target = $region37
    $region36: #{tpu_custom_call.1} parent=1 // pred_region
      %58 = dma.done [#allocation6], 2048
    $region37: #{tpu_custom_call.1} parent=1 // pred_fallthru
      _
    %v59 = vld [vmem:[%s0] sm:$0xff]
    %v60 = vld [vmem:[%s1] sm:$0x3]
    %v61 = vld [vmem:[%s2] sm:$0x1]
    %v63 = vperm.slane %v61, 0
    %vm65 = vcmask 15360
    %v67 = vsel %vm65, %v59, 0
    %vm69 = vcmask 1041408
    %v71 = vsel %vm69, %v60, 0
    %73 = vmatpush.msra.mxu0 0.0
    %74 = vmatpush.msra.mxu0 0.0
    %75 = vmatpush.msra.mxu0 0.0
    %76 = vmatpush.msra.mxu0 0.0
    %77 = vmatpush.msra.mxu0 0.0
    %78 = vmatpush.msra.mxu0 0.0
    %79 = vmatpush.msra.mxu0 0.0
    %80 = vmatpush.msra.mxu0 0.0
    %81 = vmatpush.msra.mxu0 0.0
    %82 = vmatpush.msra.mxu0 0.0
    %83 = vmatpush.msra.mxu0 0.0
    %84 = vmatpush.msra.mxu0 0.0
    %85 = vmatpush.msra.mxu0 0.0
    %86 = vmatpush.msra.mxu0 0.0
    %87 = vmatpush.msra.mxu0 0.0
    %88 = vmatpush.msra.mxu0 %v71
    %89 = vmatmul.f32.gmra.mxu0 %v67
    %v90 = vpop.f32.mrf.mxu0
    %v91 = vadd.f32 %v63, %v90
    %92 = vdwg.mxu0
    %v93 = vmax.f32 %v91, 0.0
    %v94 = vld [vmem:[#allocation2] sm:$0xff]
    %v95 = vld [vmem:[#allocation2 + $0x8] sm:$0xff]
    %v96 = vld [vmem:[#allocation2 + $0x10] sm:$0xff]
    %v97 = vld [vmem:[#allocation2 + $0x18] sm:$0xff]
    %v98 = vld [vmem:[#allocation2 + $0x20] sm:$0xff]
    %v99 = vld [vmem:[#allocation2 + $0x28] sm:$0xff]
    %v100 = vld [vmem:[#allocation2 + $0x30] sm:$0xff]
    %v101 = vld [vmem:[#allocation2 + $0x38] sm:$0xff]
    %v102 = vld [vmem:[#allocation2 + $0x40] sm:$0xff]
    %v103 = vld [vmem:[#allocation2 + $0x48] sm:$0xff]
    %v104 = vld [vmem:[#allocation2 + $0x50] sm:$0xff]
    %v105 = vld [vmem:[#allocation2 + $0x58] sm:$0xff]
    %v106 = vld [vmem:[#allocation2 + $0x60] sm:$0xff]
    %v107 = vld [vmem:[#allocation2 + $0x68] sm:$0xff]
    %v108 = vld [vmem:[#allocation2 + $0x70] sm:$0xff]
    %v109 = vld [vmem:[#allocation2 + $0x78] sm:$0xff]
    %v110 = vld [vmem:[%s4] sm:$0x1]
    %v112 = vperm.slane %v110, 0
    %114 = vmatpush.msra.mxu0 %v109
    %115 = vmatpush.msra.mxu0 %v108
    %116 = vmatpush.msra.mxu0 %v107
    %117 = vmatpush.msra.mxu0 %v106
    %118 = vmatpush.msra.mxu0 %v105
    %119 = vmatpush.msra.mxu0 %v104
    %120 = vmatpush.msra.mxu0 %v103
    %121 = vmatpush.msra.mxu0 %v102
    %122 = vmatpush.msra.mxu0 %v101
    %123 = vmatpush.msra.mxu0 %v100
    %124 = vmatpush.msra.mxu0 %v99
    %125 = vmatpush.msra.mxu0 %v98
    %126 = vmatpush.msra.mxu0 %v97
    %127 = vmatpush.msra.mxu0 %v96
    %128 = vmatpush.msra.mxu0 %v95
    %129 = vmatpush.msra.mxu0 %v94
    %130 = vmatmul.f32.gmra.mxu0 %v93
    %v131 = vpop.f32.mrf.mxu0
    %v132 = vadd.f32 %v112, %v131
    %133 = vdwg.mxu0
    %v134 = vmax.f32 %v132, 0.0
    %s135 = scalar_lea.vmem [#allocation2], 128
    %v136 = vld [vmem:[%s135] sm:$0xff]
    %v137 = vld [vmem:[%s135 + $0x8] sm:$0xff]
    %v138 = vld [vmem:[%s135 + $0x10] sm:$0xff]
    %v139 = vld [vmem:[%s135 + $0x18] sm:$0xff]
    %v140 = vld [vmem:[%s135 + $0x20] sm:$0xff]
    %v141 = vld [vmem:[%s135 + $0x28] sm:$0xff]
    %v142 = vld [vmem:[%s135 + $0x30] sm:$0xff]
    %v143 = vld [vmem:[%s135 + $0x38] sm:$0xff]
    %v144 = vld [vmem:[%s135 + $0x40] sm:$0xff]
    %v145 = vld [vmem:[%s135 + $0x48] sm:$0xff]
    %v146 = vld [vmem:[%s135 + $0x50] sm:$0xff]
    %v147 = vld [vmem:[%s135 + $0x58] sm:$0xff]
    %v148 = vld [vmem:[%s135 + $0x60] sm:$0xff]
    %v149 = vld [vmem:[%s135 + $0x68] sm:$0xff]
    %v150 = vld [vmem:[%s135 + $0x70] sm:$0xff]
    %v151 = vld [vmem:[%s135 + $0x78] sm:$0xff]
    %s152 = scalar_lea.vmem %s4, 1
    %v153 = vld [vmem:[%s152] sm:$0x1]
    %v155 = vperm.slane %v153, 0
    %157 = vmatpush.msra.mxu0 %v151
    %158 = vmatpush.msra.mxu0 %v150
    %159 = vmatpush.msra.mxu0 %v149
    %160 = vmatpush.msra.mxu0 %v148
    %161 = vmatpush.msra.mxu0 %v147
    %162 = vmatpush.msra.mxu0 %v146
    %163 = vmatpush.msra.mxu0 %v145
    %164 = vmatpush.msra.mxu0 %v144
    %165 = vmatpush.msra.mxu0 %v143
    %166 = vmatpush.msra.mxu0 %v142
    %167 = vmatpush.msra.mxu0 %v141
    %168 = vmatpush.msra.mxu0 %v140
    %169 = vmatpush.msra.mxu0 %v139
    %170 = vmatpush.msra.mxu0 %v138
    %171 = vmatpush.msra.mxu0 %v137
    %172 = vmatpush.msra.mxu0 %v136
    %173 = vmatmul.f32.gmra.mxu0 %v134
    %v174 = vpop.f32.mrf.mxu0
    %v175 = vadd.f32 %v155, %v174
    %176 = vdwg.mxu0
    %v177 = vmax.f32 %v175, 0.0
    %s178 = scalar_lea.vmem [#allocation2], 256
    %v179 = vld [vmem:[%s178] sm:$0xff]
    %v180 = vld [vmem:[%s178 + $0x8] sm:$0xff]
    %v181 = vld [vmem:[%s178 + $0x10] sm:$0xff]
    %v182 = vld [vmem:[%s178 + $0x18] sm:$0xff]
    %v183 = vld [vmem:[%s178 + $0x20] sm:$0xff]
    %v184 = vld [vmem:[%s178 + $0x28] sm:$0xff]
    %v185 = vld [vmem:[%s178 + $0x30] sm:$0xff]
    %v186 = vld [vmem:[%s178 + $0x38] sm:$0xff]
    %v187 = vld [vmem:[%s178 + $0x40] sm:$0xff]
    %v188 = vld [vmem:[%s178 + $0x48] sm:$0xff]
    %v189 = vld [vmem:[%s178 + $0x50] sm:$0xff]
    %v190 = vld [vmem:[%s178 + $0x58] sm:$0xff]
    %v191 = vld [vmem:[%s178 + $0x60] sm:$0xff]
    %v192 = vld [vmem:[%s178 + $0x68] sm:$0xff]
    %v193 = vld [vmem:[%s178 + $0x70] sm:$0xff]
    %v194 = vld [vmem:[%s178 + $0x78] sm:$0xff]
    %s195 = scalar_lea.vmem %s4, 2
    %v196 = vld [vmem:[%s195] sm:$0x1]
    %v198 = vperm.slane %v196, 0
    %200 = vmatpush.msra.mxu0 %v194
    %201 = vmatpush.msra.mxu0 %v193
    %202 = vmatpush.msra.mxu0 %v192
    %203 = vmatpush.msra.mxu0 %v191
    %204 = vmatpush.msra.mxu0 %v190
    %205 = vmatpush.msra.mxu0 %v189
    %206 = vmatpush.msra.mxu0 %v188
    %207 = vmatpush.msra.mxu0 %v187
    %208 = vmatpush.msra.mxu0 %v186
    %209 = vmatpush.msra.mxu0 %v185
    %210 = vmatpush.msra.mxu0 %v184
    %211 = vmatpush.msra.mxu0 %v183
    %212 = vmatpush.msra.mxu0 %v182
    %213 = vmatpush.msra.mxu0 %v181
    %214 = vmatpush.msra.mxu0 %v180
    %215 = vmatpush.msra.mxu0 %v179
    %216 = vmatmul.f32.gmra.mxu0 %v177
    %v217 = vpop.f32.mrf.mxu0
    %v218 = vadd.f32 %v198, %v217
    %219 = vdwg.mxu0
    %v220 = vmax.f32 %v218, 0.0
    %s221 = scalar_lea.vmem [#allocation2], 384
    %v222 = vld [vmem:[%s221] sm:$0xff]
    %v223 = vld [vmem:[%s221 + $0x8] sm:$0xff]
    %v224 = vld [vmem:[%s221 + $0x10] sm:$0xff]
    %v225 = vld [vmem:[%s221 + $0x18] sm:$0xff]
    %v226 = vld [vmem:[%s221 + $0x20] sm:$0xff]
    %v227 = vld [vmem:[%s221 + $0x28] sm:$0xff]
    %v228 = vld [vmem:[%s221 + $0x30] sm:$0xff]
    %v229 = vld [vmem:[%s221 + $0x38] sm:$0xff]
    %v230 = vld [vmem:[%s221 + $0x40] sm:$0xff]
    %v231 = vld [vmem:[%s221 + $0x48] sm:$0xff]
    %v232 = vld [vmem:[%s221 + $0x50] sm:$0xff]
    %v233 = vld [vmem:[%s221 + $0x58] sm:$0xff]
    %v234 = vld [vmem:[%s221 + $0x60] sm:$0xff]
    %v235 = vld [vmem:[%s221 + $0x68] sm:$0xff]
    %v236 = vld [vmem:[%s221 + $0x70] sm:$0xff]
    %v237 = vld [vmem:[%s221 + $0x78] sm:$0xff]
    %s238 = scalar_lea.vmem %s4, 3
    %v239 = vld [vmem:[%s238] sm:$0x1]
    %v241 = vperm.slane %v239, 0
    %243 = vmatpush.msra.mxu0 %v237
    %244 = vmatpush.msra.mxu0 %v236
    %245 = vmatpush.msra.mxu0 %v235
    %246 = vmatpush.msra.mxu0 %v234
    %247 = vmatpush.msra.mxu0 %v233
    %248 = vmatpush.msra.mxu0 %v232
    %249 = vmatpush.msra.mxu0 %v231
    %250 = vmatpush.msra.mxu0 %v230
    %251 = vmatpush.msra.mxu0 %v229
    %252 = vmatpush.msra.mxu0 %v228
    %253 = vmatpush.msra.mxu0 %v227
    %254 = vmatpush.msra.mxu0 %v226
    %255 = vmatpush.msra.mxu0 %v225
    %256 = vmatpush.msra.mxu0 %v224
    %257 = vmatpush.msra.mxu0 %v223
    %258 = vmatpush.msra.mxu0 %v222
    %259 = vmatmul.f32.gmra.mxu0 %v220
    %v260 = vpop.f32.mrf.mxu0
    %v261 = vadd.f32 %v241, %v260
    %262 = vdwg.mxu0
    %v263 = vmax.f32 %v261, 0.0
    %s264 = scalar_lea.vmem [#allocation2], 512
    %v265 = vld [vmem:[%s264] sm:$0xff]
    %v266 = vld [vmem:[%s264 + $0x8] sm:$0xff]
    %v267 = vld [vmem:[%s264 + $0x10] sm:$0xff]
    %v268 = vld [vmem:[%s264 + $0x18] sm:$0xff]
    %v269 = vld [vmem:[%s264 + $0x20] sm:$0xff]
    %v270 = vld [vmem:[%s264 + $0x28] sm:$0xff]
    %v271 = vld [vmem:[%s264 + $0x30] sm:$0xff]
    %v272 = vld [vmem:[%s264 + $0x38] sm:$0xff]
    %v273 = vld [vmem:[%s264 + $0x40] sm:$0xff]
    %v274 = vld [vmem:[%s264 + $0x48] sm:$0xff]
    %v275 = vld [vmem:[%s264 + $0x50] sm:$0xff]
    %v276 = vld [vmem:[%s264 + $0x58] sm:$0xff]
    %v277 = vld [vmem:[%s264 + $0x60] sm:$0xff]
    %v278 = vld [vmem:[%s264 + $0x68] sm:$0xff]
    %v279 = vld [vmem:[%s264 + $0x70] sm:$0xff]
    %v280 = vld [vmem:[%s264 + $0x78] sm:$0xff]
    %s281 = scalar_lea.vmem %s4, 4
    %v282 = vld [vmem:[%s281] sm:$0x1]
    %v284 = vperm.slane %v282, 0
    %286 = vmatpush.msra.mxu0 %v280
    %287 = vmatpush.msra.mxu0 %v279
    %288 = vmatpush.msra.mxu0 %v278
    %289 = vmatpush.msra.mxu0 %v277
    %290 = vmatpush.msra.mxu0 %v276
    %291 = vmatpush.msra.mxu0 %v275
    %292 = vmatpush.msra.mxu0 %v274
    %293 = vmatpush.msra.mxu0 %v273
    %294 = vmatpush.msra.mxu0 %v272
    %295 = vmatpush.msra.mxu0 %v271
    %296 = vmatpush.msra.mxu0 %v270
    %297 = vmatpush.msra.mxu0 %v269
    %298 = vmatpush.msra.mxu0 %v268
    %299 = vmatpush.msra.mxu0 %v267
    %300 = vmatpush.msra.mxu0 %v266
    %301 = vmatpush.msra.mxu0 %v265
    %302 = vmatmul.f32.gmra.mxu0 %v263
    %v303 = vpop.f32.mrf.mxu0
    %v304 = vadd.f32 %v284, %v303
    %305 = vdwg.mxu0
    %v306 = vmax.f32 %v304, 0.0
    %s307 = scalar_lea.vmem [#allocation2], 640
    %v308 = vld [vmem:[%s307] sm:$0xff]
    %v309 = vld [vmem:[%s307 + $0x8] sm:$0xff]
    %v310 = vld [vmem:[%s307 + $0x10] sm:$0xff]
    %v311 = vld [vmem:[%s307 + $0x18] sm:$0xff]
    %v312 = vld [vmem:[%s307 + $0x20] sm:$0xff]
    %v313 = vld [vmem:[%s307 + $0x28] sm:$0xff]
    %v314 = vld [vmem:[%s307 + $0x30] sm:$0xff]
    %v315 = vld [vmem:[%s307 + $0x38] sm:$0xff]
    %v316 = vld [vmem:[%s307 + $0x40] sm:$0xff]
    %v317 = vld [vmem:[%s307 + $0x48] sm:$0xff]
    %v318 = vld [vmem:[%s307 + $0x50] sm:$0xff]
    %v319 = vld [vmem:[%s307 + $0x58] sm:$0xff]
    %v320 = vld [vmem:[%s307 + $0x60] sm:$0xff]
    %v321 = vld [vmem:[%s307 + $0x68] sm:$0xff]
    %v322 = vld [vmem:[%s307 + $0x70] sm:$0xff]
    %v323 = vld [vmem:[%s307 + $0x78] sm:$0xff]
    %s324 = scalar_lea.vmem %s4, 5
    %v325 = vld [vmem:[%s324] sm:$0x1]
    %v327 = vperm.slane %v325, 0
    %329 = vmatpush.msra.mxu0 %v323
    %330 = vmatpush.msra.mxu0 %v322
    %331 = vmatpush.msra.mxu0 %v321
    %332 = vmatpush.msra.mxu0 %v320
    %333 = vmatpush.msra.mxu0 %v319
    %334 = vmatpush.msra.mxu0 %v318
    %335 = vmatpush.msra.mxu0 %v317
    %336 = vmatpush.msra.mxu0 %v316
    %337 = vmatpush.msra.mxu0 %v315
    %338 = vmatpush.msra.mxu0 %v314
    %339 = vmatpush.msra.mxu0 %v313
    %340 = vmatpush.msra.mxu0 %v312
    %341 = vmatpush.msra.mxu0 %v311
    %342 = vmatpush.msra.mxu0 %v310
    %343 = vmatpush.msra.mxu0 %v309
    %344 = vmatpush.msra.mxu0 %v308
    %345 = vmatmul.f32.gmra.mxu0 %v306
    %v346 = vpop.f32.mrf.mxu0
    %v347 = vadd.f32 %v327, %v346
    %348 = vdwg.mxu0
    %v349 = vmax.f32 %v347, 0.0
    %s350 = scalar_lea.vmem [#allocation2], 768
    %v351 = vld [vmem:[%s350] sm:$0xff]
    %v352 = vld [vmem:[%s350 + $0x8] sm:$0xff]
    %v353 = vld [vmem:[%s350 + $0x10] sm:$0xff]
    %v354 = vld [vmem:[%s350 + $0x18] sm:$0xff]
    %v355 = vld [vmem:[%s350 + $0x20] sm:$0xff]
    %v356 = vld [vmem:[%s350 + $0x28] sm:$0xff]
    %v357 = vld [vmem:[%s350 + $0x30] sm:$0xff]
    %v358 = vld [vmem:[%s350 + $0x38] sm:$0xff]
    %v359 = vld [vmem:[%s350 + $0x40] sm:$0xff]
    %v360 = vld [vmem:[%s350 + $0x48] sm:$0xff]
    %v361 = vld [vmem:[%s350 + $0x50] sm:$0xff]
    %v362 = vld [vmem:[%s350 + $0x58] sm:$0xff]
    %v363 = vld [vmem:[%s350 + $0x60] sm:$0xff]
    %v364 = vld [vmem:[%s350 + $0x68] sm:$0xff]
    %v365 = vld [vmem:[%s350 + $0x70] sm:$0xff]
    %v366 = vld [vmem:[%s350 + $0x78] sm:$0xff]
    %s367 = scalar_lea.vmem %s4, 6
    %v368 = vld [vmem:[%s367] sm:$0x1]
    %v370 = vperm.slane %v368, 0
    %372 = vmatpush.msra.mxu0 %v366
    %373 = vmatpush.msra.mxu0 %v365
    %374 = vmatpush.msra.mxu0 %v364
    %375 = vmatpush.msra.mxu0 %v363
    %376 = vmatpush.msra.mxu0 %v362
    %377 = vmatpush.msra.mxu0 %v361
    %378 = vmatpush.msra.mxu0 %v360
    %379 = vmatpush.msra.mxu0 %v359
    %380 = vmatpush.msra.mxu0 %v358
    %381 = vmatpush.msra.mxu0 %v357
    %382 = vmatpush.msra.mxu0 %v356
    %383 = vmatpush.msra.mxu0 %v355
    %384 = vmatpush.msra.mxu0 %v354
    %385 = vmatpush.msra.mxu0 %v353
    %386 = vmatpush.msra.mxu0 %v352
    %387 = vmatpush.msra.mxu0 %v351
    %388 = vmatmul.f32.gmra.mxu0 %v349
    %v389 = vpop.f32.mrf.mxu0
    %v390 = vadd.f32 %v370, %v389
    %391 = vdwg.mxu0
    %v392 = vmax.f32 %v390, 0.0
    %s393 = scalar_lea.vmem [#allocation2], 896
    %v394 = vld [vmem:[%s393] sm:$0xff]
    %v395 = vld [vmem:[%s393 + $0x8] sm:$0xff]
    %v396 = vld [vmem:[%s393 + $0x10] sm:$0xff]
    %v397 = vld [vmem:[%s393 + $0x18] sm:$0xff]
    %v398 = vld [vmem:[%s393 + $0x20] sm:$0xff]
    %v399 = vld [vmem:[%s393 + $0x28] sm:$0xff]
    %v400 = vld [vmem:[%s393 + $0x30] sm:$0xff]
    %v401 = vld [vmem:[%s393 + $0x38] sm:$0xff]
    %v402 = vld [vmem:[%s393 + $0x40] sm:$0xff]
    %v403 = vld [vmem:[%s393 + $0x48] sm:$0xff]
    %v404 = vld [vmem:[%s393 + $0x50] sm:$0xff]
    %v405 = vld [vmem:[%s393 + $0x58] sm:$0xff]
    %v406 = vld [vmem:[%s393 + $0x60] sm:$0xff]
    %v407 = vld [vmem:[%s393 + $0x68] sm:$0xff]
    %v408 = vld [vmem:[%s393 + $0x70] sm:$0xff]
    %v409 = vld [vmem:[%s393 + $0x78] sm:$0xff]
    %s410 = scalar_lea.vmem %s4, 7
    %v411 = vld [vmem:[%s410] sm:$0x1]
    %v413 = vperm.slane %v411, 0
    %415 = vmatpush.msra.mxu0 %v409
    %416 = vmatpush.msra.mxu0 %v408
    %417 = vmatpush.msra.mxu0 %v407
    %418 = vmatpush.msra.mxu0 %v406
    %419 = vmatpush.msra.mxu0 %v405
    %420 = vmatpush.msra.mxu0 %v404
    %421 = vmatpush.msra.mxu0 %v403
    %422 = vmatpush.msra.mxu0 %v402
    %423 = vmatpush.msra.mxu0 %v401
    %424 = vmatpush.msra.mxu0 %v400
    %425 = vmatpush.msra.mxu0 %v399
    %426 = vmatpush.msra.mxu0 %v398
    %427 = vmatpush.msra.mxu0 %v397
    %428 = vmatpush.msra.mxu0 %v396
    %429 = vmatpush.msra.mxu0 %v395
    %430 = vmatpush.msra.mxu0 %v394
    %431 = vmatmul.f32.gmra.mxu0 %v392
    %v432 = vpop.f32.mrf.mxu0
    %v433 = vadd.f32 %v413, %v432
    %434 = vdwg.mxu0
    %v435 = vmax.f32 %v433, 0.0
    %s436 = scalar_lea.vmem [#allocation2], 1024
    %v437 = vld [vmem:[%s436] sm:$0xff]
    %v438 = vld [vmem:[%s436 + $0x8] sm:$0xff]
    %v439 = vld [vmem:[%s436 + $0x10] sm:$0xff]
    %v440 = vld [vmem:[%s436 + $0x18] sm:$0xff]
    %v441 = vld [vmem:[%s436 + $0x20] sm:$0xff]
    %v442 = vld [vmem:[%s436 + $0x28] sm:$0xff]
    %v443 = vld [vmem:[%s436 + $0x30] sm:$0xff]
    %v444 = vld [vmem:[%s436 + $0x38] sm:$0xff]
    %v445 = vld [vmem:[%s436 + $0x40] sm:$0xff]
    %v446 = vld [vmem:[%s436 + $0x48] sm:$0xff]
    %v447 = vld [vmem:[%s436 + $0x50] sm:$0xff]
    %v448 = vld [vmem:[%s436 + $0x58] sm:$0xff]
    %v449 = vld [vmem:[%s436 + $0x60] sm:$0xff]
    %v450 = vld [vmem:[%s436 + $0x68] sm:$0xff]
    %v451 = vld [vmem:[%s436 + $0x70] sm:$0xff]
    %v452 = vld [vmem:[%s436 + $0x78] sm:$0xff]
    %s453 = scalar_lea.vmem %s4, 8
    %v454 = vld [vmem:[%s453] sm:$0x1]
    %v456 = vperm.slane %v454, 0
    %458 = vmatpush.msra.mxu0 %v452
    %459 = vmatpush.msra.mxu0 %v451
    %460 = vmatpush.msra.mxu0 %v450
    %461 = vmatpush.msra.mxu0 %v449
    %462 = vmatpush.msra.mxu0 %v448
    %463 = vmatpush.msra.mxu0 %v447
    %464 = vmatpush.msra.mxu0 %v446
    %465 = vmatpush.msra.mxu0 %v445
    %466 = vmatpush.msra.mxu0 %v444
    %467 = vmatpush.msra.mxu0 %v443
    %468 = vmatpush.msra.mxu0 %v442
    %469 = vmatpush.msra.mxu0 %v441
    %470 = vmatpush.msra.mxu0 %v440
    %471 = vmatpush.msra.mxu0 %v439
    %472 = vmatpush.msra.mxu0 %v438
    %473 = vmatpush.msra.mxu0 %v437
    %474 = vmatmul.f32.gmra.mxu0 %v435
    %v475 = vpop.f32.mrf.mxu0
    %v476 = vadd.f32 %v456, %v475
    %477 = vdwg.mxu0
    %v478 = vmax.f32 %v476, 0.0
    %s479 = scalar_lea.vmem [#allocation2], 1152
    %v480 = vld [vmem:[%s479] sm:$0xff]
    %v481 = vld [vmem:[%s479 + $0x8] sm:$0xff]
    %v482 = vld [vmem:[%s479 + $0x10] sm:$0xff]
    %v483 = vld [vmem:[%s479 + $0x18] sm:$0xff]
    %v484 = vld [vmem:[%s479 + $0x20] sm:$0xff]
    %v485 = vld [vmem:[%s479 + $0x28] sm:$0xff]
    %v486 = vld [vmem:[%s479 + $0x30] sm:$0xff]
    %v487 = vld [vmem:[%s479 + $0x38] sm:$0xff]
    %v488 = vld [vmem:[%s479 + $0x40] sm:$0xff]
    %v489 = vld [vmem:[%s479 + $0x48] sm:$0xff]
    %v490 = vld [vmem:[%s479 + $0x50] sm:$0xff]
    %v491 = vld [vmem:[%s479 + $0x58] sm:$0xff]
    %v492 = vld [vmem:[%s479 + $0x60] sm:$0xff]
    %v493 = vld [vmem:[%s479 + $0x68] sm:$0xff]
    %v494 = vld [vmem:[%s479 + $0x70] sm:$0xff]
    %v495 = vld [vmem:[%s479 + $0x78] sm:$0xff]
    %s496 = scalar_lea.vmem %s4, 9
    %v497 = vld [vmem:[%s496] sm:$0x1]
    %v499 = vperm.slane %v497, 0
    %501 = vmatpush.msra.mxu0 %v495
    %502 = vmatpush.msra.mxu0 %v494
    %503 = vmatpush.msra.mxu0 %v493
    %504 = vmatpush.msra.mxu0 %v492
    %505 = vmatpush.msra.mxu0 %v491
    %506 = vmatpush.msra.mxu0 %v490
    %507 = vmatpush.msra.mxu0 %v489
    %508 = vmatpush.msra.mxu0 %v488
    %509 = vmatpush.msra.mxu0 %v487
    %510 = vmatpush.msra.mxu0 %v486
    %511 = vmatpush.msra.mxu0 %v485
    %512 = vmatpush.msra.mxu0 %v484
    %513 = vmatpush.msra.mxu0 %v483
    %514 = vmatpush.msra.mxu0 %v482
    %515 = vmatpush.msra.mxu0 %v481
    %516 = vmatpush.msra.mxu0 %v480
    %517 = vmatmul.f32.gmra.mxu0 %v478
    %v518 = vpop.f32.mrf.mxu0
    %v519 = vadd.f32 %v499, %v518
    %520 = vdwg.mxu0
    %v521 = vmax.f32 %v519, 0.0
    %v522 = vld [vmem:[#allocation5] sm:$0xff]
    %v523 = vld [vmem:[#allocation5 + $0x8] sm:$0xff]
    %v524 = vld [vmem:[#allocation5 + $0x10] sm:$0xff]
    %v525 = vld [vmem:[#allocation5 + $0x18] sm:$0xff]
    %v526 = vld [vmem:[#allocation5 + $0x20] sm:$0xff]
    %v527 = vld [vmem:[#allocation5 + $0x28] sm:$0xff]
    %v528 = vld [vmem:[#allocation5 + $0x30] sm:$0xff]
    %v529 = vld [vmem:[#allocation5 + $0x38] sm:$0xff]
    %v530 = vld [vmem:[#allocation5 + $0x40] sm:$0xff]
    %v531 = vld [vmem:[#allocation5 + $0x48] sm:$0xff]
    %v532 = vld [vmem:[#allocation5 + $0x50] sm:$0xff]
    %v533 = vld [vmem:[#allocation5 + $0x58] sm:$0xff]
    %v534 = vld [vmem:[#allocation5 + $0x60] sm:$0xff]
    %v535 = vld [vmem:[#allocation5 + $0x68] sm:$0xff]
    %v536 = vld [vmem:[#allocation5 + $0x70] sm:$0xff]
    %v537 = vld [vmem:[#allocation5 + $0x78] sm:$0xff]
    %v538 = vld [vmem:[%s6] sm:$0x1]
    %v540 = vperm.slane %v538, 0
    %542 = vmatpush.msra.mxu0 %v537
    %543 = vmatpush.msra.mxu0 %v536
    %544 = vmatpush.msra.mxu0 %v535
    %545 = vmatpush.msra.mxu0 %v534
    %546 = vmatpush.msra.mxu0 %v533
    %547 = vmatpush.msra.mxu0 %v532
    %548 = vmatpush.msra.mxu0 %v531
    %549 = vmatpush.msra.mxu0 %v530
    %550 = vmatpush.msra.mxu0 %v529
    %551 = vmatpush.msra.mxu0 %v528
    %552 = vmatpush.msra.mxu0 %v527
    %553 = vmatpush.msra.mxu0 %v526
    %554 = vmatpush.msra.mxu0 %v525
    %555 = vmatpush.msra.mxu0 %v524
    %556 = vmatpush.msra.mxu0 %v523
    %557 = vmatpush.msra.mxu0 %v522
    %558 = vmatmul.f32.gmra.mxu0 %v521
    %v559 = vpop.f32.mrf.mxu0
    %v560 = vadd.f32 %v540, %v559
    %561 = vdwg.mxu0
    %562 = vst [vmem:[#allocation7] sm:$0xff] %v560
    // Predicated region
    $region38: #{tpu_custom_call.1} parent=1 // pred_check
      _
    $region39: #{tpu_custom_call.1} parent=1 // pred_check_branch
      %564 = sbr.rel (0) target = $region41
    $region40: #{tpu_custom_call.1} parent=1 // pred_region
      %566 = vsyncadd [#allocation4], 0
      %s568 = sshll.u32 [#allocation7], 4
      %s569 = int_to_ptr.vmem [resolvable:$true] %s568
      %s570 = sshll.u32 %s7, 4
      %s571 = int_to_ptr.hbm [resolvable:$true] %s570
      %573 = dma.vmem_to_hbm [thread:$0]  %s569, 128, %s571, [#allocation4]
    $region41: #{tpu_custom_call.1} parent=1 // pred_fallthru
      _
    // Predicated region
    $region42: #{tpu_custom_call.1} parent=1 // pred_check
      _
    $region43: #{tpu_custom_call.1} parent=1 // pred_check_branch
      %575 = sbr.rel (0) target = $region45
    $region44: #{tpu_custom_call.1} parent=1 // pred_region
      %577 = dma.done [#allocation4], 128
    $region45: #{tpu_custom_call.1} parent=1 // pred_fallthru
      _
    %578 = vsyncpa [#allocation3], 1
    %579 = vsyncpa [#allocation6], 1
    %580 = vsyncpa [#allocation4], 1

</llo_original>
